<compile_context>
chip_gen: v7x
topology: tpu7x:2x2x1
jax: 0.10.0
libtpu: 0.0.40
codegen_flags: <defaults>
</compile_context>

<pallas_src>
import functools

import jax
import jax.numpy as jnp
import numpy as np
from jax.experimental import pallas as pl
from jax.experimental.pallas import tpu as pltpu


class PoseParameters:
    """JAX-side analogue of the PyTorch PoseParameters container."""

    def __init__(self, translations, rotations):
        self.translations = translations
        self.rotations = rotations

    @property
    def members(self):
        return (self.translations, self.rotations)

    def __len__(self):
        return len(self.members)

    def __getitem__(self, i):
        return self.members[i]


# Registered as a pytree so it can be returned from jit-compiled functions.
jax.tree_util.register_pytree_node(
    PoseParameters,
    lambda p: ((p.translations, p.rotations), None),
    lambda _, children: PoseParameters(*children),
)


def _round_up(x, m):
    return (x + m - 1) // m * m


def _make_group_sum_matrix(n_primitives, n_pad, trans_cols):
    """(n_pad, n_pad) 0/1 matrix with 4x4 all-ones blocks over the quaternion
    column range [trans_cols, trans_cols + 4*M); zeros elsewhere.
    (s @ G)[:, j] = sum of squares of the quaternion group column j belongs to."""
    col = np.arange(n_pad)
    in_rot = (col >= trans_cols) & (col < trans_cols + 4 * n_primitives)
    group = np.where(in_rot, (col - trans_cols) // 4, -1)
    same = (group[:, None] == group[None, :]) & in_rot[:, None] & in_rot[None, :]
    return same.astype(np.float32)


def build_fused_pose_params(wt, bt, wr, br, n_primitives, *,
                            operand_dtype=jnp.bfloat16):
    """Build the fused / lane-padded operands ONCE (hoist out of the step fn).

    Returns a dict of device arrays:
      w      : (feat, n_pad)  operand_dtype   fused [Wt | Wr | 0]
      b      : (1, n_pad)     f32             fused [bt | br | 0]
      g      : (n_pad, n_pad) operand_dtype   block-diagonal quaternion group-sum
      mask_t : (1, n_pad)     f32             1.0 on translation lanes, else 0.0
    """
    wt = np.asarray(wt, np.float32)
    wr = np.asarray(wr, np.float32)
    bt = np.asarray(bt, np.float32).reshape(1, -1)
    br = np.asarray(br, np.float32).reshape(1, -1)

    feat = wt.shape[0]
    M = n_primitives
    trans_cols = 3 * M
    n_real = 7 * M
    n_pad = _round_up(max(n_real, 128), 128)  # lane-dense output width

    w = np.zeros((feat, n_pad), np.float32)
    w[:, :trans_cols] = wt
    w[:, trans_cols:n_real] = wr

    b = np.zeros((1, n_pad), np.float32)
    b[:, :trans_cols] = bt
    b[:, trans_cols:n_real] = br

    g = _make_group_sum_matrix(M, n_pad, trans_cols)

    mask_t = np.zeros((1, n_pad), np.float32)
    mask_t[:, :trans_cols] = 1.0

    return {
        "w": jnp.asarray(w, operand_dtype),      # bf16: MXU-native
        "b": jnp.asarray(b, jnp.float32),
        "g": jnp.asarray(g, operand_dtype),      # exactly 0/1 -> exact in bf16
        "mask_t": jnp.asarray(mask_t, jnp.float32),
    }


def _pose_fused_kernel(x_ref, w_ref, b_ref, g_ref, mask_ref, o_ref, *,
                       operand_dtype):
    # Single fused matmul for both heads (MXU), bf16 operands, f32 accumulate.
    x = x_ref[...].astype(operand_dtype)
    y = jnp.dot(x, w_ref[...], preferred_element_type=jnp.float32) + b_ref[...]

    # Translations branch: 0.51 * tanh (EUP).  Computed on all lanes and
    # lane-selected below; cheaper than any cross-lane data movement.
    t = 0.51 * jnp.tanh(y)

    # Rotations branch: per-quaternion sum of squares via a block-diagonal 0/1
    # matmul on the otherwise idle MXU (no reshape / cross-lane reduce).
    # y^2 and G in bf16 (MXU-native); accumulation stays f32.
    sumsq = jnp.dot((y * y).astype(operand_dtype), g_ref[...],
                    preferred_element_type=jnp.float32)
    # F.normalize semantics: x / max(||x||, eps), eps = 1e-12.
    inv_norm = jax.lax.rsqrt(jnp.maximum(sumsq, 1e-24))
    r = y * inv_norm  # translation / padding lanes: finite junk, masked below.

    # Lane select via the precomputed resident mask (no per-step iota).
    o_ref[...] = jnp.where(mask_ref[...] > 0.0, t, r).astype(o_ref.dtype)


def _pick_tile_b(B):
    # 128-256 row tiles feed the 256x256 MXU on v6e/v7x well and are fine for
    # v5e's 4x128x128 MXU.  Prefer >=2 grid steps so that v7x's two
    # TensorCores both get work via dimension_semantics=("parallel",).
    if B <= 64:
        return _round_up(max(B, 8), 8)
    for t in (256, 128, 64):
        if pl.cdiv(B, t) >= 2:
            return t
    return 64


def _vmem_budget_bytes():
    # Per-generation VMEM budget: ~3/4 of physical capacity (128 MiB on
    # v5e/v6e, 64 MiB per TensorCore on v7x); conservative fallback otherwise.
    try:
        cap = int(pltpu.get_tpu_info().vmem_capacity_bytes)
    except Exception:
        cap = 64 << 20
    return max(16 << 20, (cap * 3) // 4)


def pose_forward(x, fused, *, n_primitives, tile_b=None,
                 operand_dtype=jnp.bfloat16, out_dtype=jnp.float32):
    """Fused Pose forward.  x: (B, feat) float32 (or bf16).
    `fused` must come from build_fused_pose_params (built once, reused).
    Returns PoseParameters with translations (B, M, 3) and unit-norm
    rotations (B, M, 4)."""
    B, feat = x.shape
    M = n_primitives
    trans_cols = 3 * M
    n_real = 7 * M

    w, b, g, mask_t = fused["w"], fused["b"], fused["g"], fused["mask_t"]
    n_pad = w.shape[1]
    assert w.shape[0] == feat and g.shape == (n_pad, n_pad)

    if tile_b is None:
        tile_b = _pick_tile_b(B)
    tile_b = max(8, _round_up(min(tile_b, _round_up(B, 8)), 8))
    grid = (pl.cdiv(B, tile_b),)

    op_bytes = np.dtype(operand_dtype).itemsize
    x_bytes = np.dtype(x.dtype).itemsize
    out_bytes = np.dtype(out_dtype).itemsize

    n_rows = grid[0] * tile_b
    flops = 2 * n_rows * feat * n_pad + 2 * n_rows * n_pad * n_pad
    transcendentals = 2 * n_rows * n_pad                       # tanh + rsqrt
    bytes_accessed = (B * feat * x_bytes + feat * n_pad * op_bytes
                      + 2 * n_pad * 4 + n_pad * n_pad * op_bytes
                      + B * n_pad * out_bytes)

    # Double-buffered X / out tiles + single-buffered residents + headroom,
    # clamped to this generation's budget (~96 MiB v5e/v6e, ~48 MiB v7x).
    vmem_bytes = (2 * (tile_b * feat * x_bytes + tile_b * n_pad * out_bytes)
                  + feat * n_pad * op_bytes + n_pad * n_pad * op_bytes
                  + 2 * n_pad * 4)
    vmem_bytes = int(min(max(vmem_bytes + (2 << 20), 4 << 20),
                         _vmem_budget_bytes()))

    out = pl.pallas_call(
        functools.partial(_pose_fused_kernel, operand_dtype=operand_dtype),
        out_shape=jax.ShapeDtypeStruct((B, n_pad), out_dtype),
        grid=grid,
        in_specs=[
            # X: blocked over batch, default double-buffering; the ragged last
            # block (B not a multiple of tile_b) is masked by Pallas.
            pl.BlockSpec((tile_b, feat), lambda i: (i, 0)),
            # Resident operands: constant index_map + single buffer.
            pl.BlockSpec((feat, n_pad), lambda i: (0, 0),
                         pipeline_mode=pl.Buffered(1)),
            pl.BlockSpec((1, n_pad), lambda i: (0, 0),
                         pipeline_mode=pl.Buffered(1)),
            pl.BlockSpec((n_pad, n_pad), lambda i: (0, 0),
                         pipeline_mode=pl.Buffered(1)),
            pl.BlockSpec((1, n_pad), lambda i: (0, 0),
                         pipeline_mode=pl.Buffered(1)),
        ],
        out_specs=pl.BlockSpec((tile_b, n_pad), lambda i: (i, 0)),
        compiler_params=pltpu.CompilerParams(
            dimension_semantics=("parallel",),
            vmem_limit_bytes=vmem_bytes,
        ),
        cost_estimate=pl.CostEstimate(
            flops=int(flops),
            transcendentals=int(transcendentals),
            bytes_accessed=int(bytes_accessed),
        ),
    )(x, w, b, g, mask_t)

    translations = out[:, :trans_cols].reshape(B, M, 3)
    rotations = out[:, trans_cols:n_real].reshape(B, M, 4)
    return PoseParameters(translations, rotations)


def make_params(key, feat_dim, n_primitives):
    """Deterministic parameter init (synthetic; no checkpoint load)."""
    k1, k2, k3, k4 = jax.random.split(key, 4)
    scale = 1.0 / jnp.sqrt(jnp.float32(feat_dim))
    wt = jax.random.normal(k1, (feat_dim, n_primitives * 3), jnp.float32) * scale
    bt = jax.random.normal(k2, (1, n_primitives * 3), jnp.float32) * 0.01
    wr = jax.random.normal(k3, (feat_dim, n_primitives * 4), jnp.float32) * scale
    br = jax.random.normal(k4, (1, n_primitives * 4), jnp.float32) * 0.01
    return wt, bt, wr, br


def pose_reference(x, wt, bt, wr, br, n_primitives):
    """Pure-JAX f32 reference matching the PyTorch head semantics."""
    B = x.shape[0]
    t = 0.51 * jnp.tanh(x @ wt + bt)
    r = (x @ wr + br).reshape(B, n_primitives, 4)
    norm = jnp.linalg.norm(r, axis=-1, keepdims=True)
    r = r / jnp.maximum(norm, 1e-12)                 # F.normalize semantics
    return t.reshape(B, n_primitives, 3), r


if __name__ == "__main__":
    B = 2    # batch
    F = 32   # feature (hidden) dim of X
    M = 4    # n_primitives

    key = jax.random.PRNGKey(0)
    kx, kp = jax.random.split(key)
    x = jax.random.normal(kx, (B, F), jnp.float32)
    wt, bt, wr, br = make_params(kp, F, M)

    # Fused / padded operands are built ONCE and reused across calls.
    fused = build_fused_pose_params(wt, bt, wr, br, M)
    pose_apply = jax.jit(lambda xx, pp: pose_forward(xx, pp, n_primitives=M))

    pose = pose_apply(x, fused)
    jax.block_until_ready(pose.translations)
    jax.block_until_ready(pose.rotations)

    # structural checks
    assert pose.translations.shape == (B, M, 3)
    assert pose.rotations.shape == (B, M, 4)

    # quaternions unit-norm (bf16 group-sum matmul -> ~1e-3 norm error),
    # translations bounded by 0.51
    qn = jnp.linalg.norm(pose.rotations, axis=-1)
    assert bool(jnp.all(jnp.abs(qn - 1.0) < 5e-3))
    assert bool(jnp.all(jnp.abs(pose.translations) <= 0.51 + 1e-5))

    # loose comparison vs f32 reference (kernel uses bf16 MXU operands)
    t_ref, r_ref = pose_reference(x, wt, bt, wr, br, M)
    assert bool(jnp.allclose(pose.translations, t_ref, atol=5e-2))
    assert bool(jnp.allclose(pose.rotations, r_ref, atol=5e-2))

    print("KERNEL_OK")
</pallas_src>

<mosaic_0001>
module attributes {stable_mosaic.version = 11 : i64} {
  func.func @_pose_fused_kernel(%arg0: i32, %arg1: memref<8x32xf32, #tpu.memory_space<vmem>>, %arg2: memref<32x128xbf16, #tpu.memory_space<vmem>>, %arg3: memref<1x128xf32, #tpu.memory_space<vmem>>, %arg4: memref<128x128xbf16, #tpu.memory_space<vmem>>, %arg5: memref<1x128xf32, #tpu.memory_space<vmem>>, %arg6: memref<8x128xf32, #tpu.memory_space<vmem>>) attributes {dimension_semantics = [#tpu.dimension_semantics<parallel>], iteration_bounds = array<i64: 1>, scalar_prefetch = 0 : i64, scratch_operands = 0 : i64, tpu.core_type = #tpu.core_type<tc>, window_params = [{transform_indices = @transform_0, window_bounds = array<i64: 8, 32>}, {pipeline_mode = #tpu.pipeline_mode<synchronous>, transform_indices = @transform_1, window_bounds = array<i64: 32, 128>}, {pipeline_mode = #tpu.pipeline_mode<synchronous>, transform_indices = @transform_2, window_bounds = array<i64: 1, 128>}, {pipeline_mode = #tpu.pipeline_mode<synchronous>, transform_indices = @transform_3, window_bounds = array<i64: 128, 128>}, {pipeline_mode = #tpu.pipeline_mode<synchronous>, transform_indices = @transform_4, window_bounds = array<i64: 1, 128>}, {transform_indices = @transform_5, window_bounds = array<i64: 8, 128>}]} {
    %c0 = arith.constant 0 : index
    %c0_0 = arith.constant 0 : index
    %0 = vector.load %arg1[%c0, %c0_0] : memref<8x32xf32, #tpu.memory_space<vmem>>, vector<8x32xf32>
    %1 = arith.truncf %0 : vector<8x32xf32> to vector<8x32xbf16>
    %c0_1 = arith.constant 0 : index
    %c0_2 = arith.constant 0 : index
    %2 = vector.load %arg2[%c0_1, %c0_2] : memref<32x128xbf16, #tpu.memory_space<vmem>>, vector<32x128xbf16>
    %cst = arith.constant dense<0.000000e+00> : vector<8x128xf32>
    %3 = tpu.matmul %1, %2, %cst {dimension_numbers = #tpu.dot_dimension_numbers<[1], [0], [0], [1], [0, 0, 1, 1], [], []>} : vector<8x32xbf16>, vector<32x128xbf16>, vector<8x128xf32> -> vector<8x128xf32>
    %c0_3 = arith.constant 0 : index
    %c0_4 = arith.constant 0 : index
    %4 = vector.load %arg3[%c0_3, %c0_4] : memref<1x128xf32, #tpu.memory_space<vmem>>, vector<1x128xf32>
    %5 = vector.broadcast %4 : vector<1x128xf32> to vector<8x128xf32>
    %6 = arith.addf %3, %5 : vector<8x128xf32>
    %7 = math.tanh %6 : vector<8x128xf32>
    %cst_5 = arith.constant 5.100000e-01 : f32
    %8 = vector.broadcast %cst_5 : f32 to vector<8x128xf32>
    %9 = arith.mulf %8, %7 : vector<8x128xf32>
    %10 = arith.mulf %6, %6 : vector<8x128xf32>
    %11 = arith.truncf %10 : vector<8x128xf32> to vector<8x128xbf16>
    %c0_6 = arith.constant 0 : index
    %c0_7 = arith.constant 0 : index
    %12 = vector.load %arg4[%c0_6, %c0_7] : memref<128x128xbf16, #tpu.memory_space<vmem>>, vector<128x128xbf16>
    %cst_8 = arith.constant dense<0.000000e+00> : vector<8x128xf32>
    %13 = tpu.matmul %11, %12, %cst_8 {dimension_numbers = #tpu.dot_dimension_numbers<[1], [0], [0], [1], [0, 0, 1, 1], [], []>} : vector<8x128xbf16>, vector<128x128xbf16>, vector<8x128xf32> -> vector<8x128xf32>
    %cst_9 = arith.constant 1.000000e-24 : f32
    %14 = vector.broadcast %cst_9 : f32 to vector<8x128xf32>
    %15 = arith.maximumf %13, %14 : vector<8x128xf32>
    %16 = math.rsqrt %15 : vector<8x128xf32>
    %17 = arith.mulf %6, %16 : vector<8x128xf32>
    %c0_10 = arith.constant 0 : index
    %c0_11 = arith.constant 0 : index
    %18 = vector.load %arg5[%c0_10, %c0_11] : memref<1x128xf32, #tpu.memory_space<vmem>>, vector<1x128xf32>
    %cst_12 = arith.constant 0.000000e+00 : f32
    %19 = vector.broadcast %cst_12 : f32 to vector<1x128xf32>
    %20 = arith.cmpf ogt, %18, %19 : vector<1x128xf32>
    %21 = vector.shape_cast %20 : vector<1x128xi1> to vector<1x128xi1>
    %22 = vector.broadcast %21 : vector<1x128xi1> to vector<8x128xi1>
    %23 = arith.select %22, %9, %17 : vector<8x128xi1>, vector<8x128xf32>
    %c0_13 = arith.constant 0 : index
    %c0_14 = arith.constant 0 : index
    %24 = vector.load %arg6[%c0_13, %c0_14] : memref<8x128xf32, #tpu.memory_space<vmem>>, vector<8x128xf32>
    tpu.vector_store %arg6[%c0_13, %c0_14], %23 {strides = array<i32>} : memref<8x128xf32, #tpu.memory_space<vmem>>, vector<8x128xf32>,
    return
  }
  func.func @transform_0(%arg0: i32) -> (i32, i32) {
    %c0_i32 = arith.constant 0 : i32
    %c0_i32_0 = arith.constant 0 : i32
    return %arg0, %c0_i32 : i32, i32
  }
  func.func @transform_1(%arg0: i32) -> (i32, i32) {
    %c0_i32 = arith.constant 0 : i32
    %c0_i32_0 = arith.constant 0 : i32
    %c0_i32_1 = arith.constant 0 : i32
    return %c0_i32, %c0_i32_0 : i32, i32
  }
  func.func @transform_2(%arg0: i32) -> (i32, i32) {
    %c0_i32 = arith.constant 0 : i32
    %c0_i32_0 = arith.constant 0 : i32
    %c0_i32_1 = arith.constant 0 : i32
    return %c0_i32, %c0_i32_0 : i32, i32
  }
  func.func @transform_3(%arg0: i32) -> (i32, i32) {
    %c0_i32 = arith.constant 0 : i32
    %c0_i32_0 = arith.constant 0 : i32
    %c0_i32_1 = arith.constant 0 : i32
    return %c0_i32, %c0_i32_0 : i32, i32
  }
  func.func @transform_4(%arg0: i32) -> (i32, i32) {
    %c0_i32 = arith.constant 0 : i32
    %c0_i32_0 = arith.constant 0 : i32
    %c0_i32_1 = arith.constant 0 : i32
    return %c0_i32, %c0_i32_0 : i32, i32
  }
  func.func @transform_5(%arg0: i32) -> (i32, i32) {
    %c0_i32 = arith.constant 0 : i32
    %c0_i32_0 = arith.constant 0 : i32
    return %arg0, %c0_i32 : i32, i32
  }
}

</mosaic_0001>

<llo_original>
// kernel: _lambda_.1
$region0: #{_lambda_.1}
  #allocation0 [shape = 'u32[]', space=smem, size = 0x4, offset = 0x4, fixed_abs, tag = 'smem constant byte address 0x4 - core index']
  #allocation1 [shape = 'u32[144,128]{1,0:T(1,128)}', space=vmem, size = 0x12000, scoped, tag = 'internal scratch']
  %s0 = inlined_call_operand.hbm [shape: f32[2,32], index: 0, kind: input, shape index: {}]
  %s1 = inlined_call_operand.hbm [shape: bf16[32,128], index: 1, kind: input, shape index: {}]
  %s2 = inlined_call_operand.vmem [shape: f32[1,128], index: 2, kind: input, shape index: {}]
  %s3 = inlined_call_operand.hbm [shape: bf16[128,128], index: 3, kind: input, shape index: {}]
  %s4 = inlined_call_operand.vmem [shape: f32[1,128], index: 4, kind: input, shape index: {}]
  %s5 = inlined_call_operand.vmem [shape: f32[2,128], index: 5, kind: output, shape index: {}]
  %s6 = sld [smem:[#allocation0]]
  $region72: #{_lambda_.1} parent=0
    _
  %s8 = ssub.s32 1, %s6
  %s9 = scalar_select 0, %s8, %s6
  $region1: #{_lambda_.1} parent=0
    #allocation2 [shape = 'u8[4096]{0}', space=vmem, size = 0x1000, scoped, tag = 'input window, operand 0, single buffered']
    #allocation3 [shape = 's32[1]{0}', space=sflag, size = 0x4, scoped, tag = 'scoped memory for _lambda_.1']
    #allocation4 [shape = 'u8[8192]{0}', space=vmem, size = 0x2000, scoped, tag = 'input window, operand 1, single buffered']
    #allocation5 [shape = 's32[1]{0}', space=sflag, size = 0x4, scoped, tag = 'scoped memory for _lambda_.1']
    #allocation6 [shape = 'u8[32768]{0}', space=vmem, size = 0x8000, scoped, tag = 'input window, operand 3, single buffered']
    #allocation7 [shape = 'u8[4096]{0}', space=vmem, size = 0x1000, scoped, tag = 'output window, operand 0, single buffered']
    %10 = vsyncpa [#allocation3], 0
    %11 = vsyncpa [#allocation5], 0
    // Predicated region
    $region2: #{_lambda_.1} parent=1 // pred_check
      _
    $region3: #{_lambda_.1} parent=1 // pred_check_branch
      %13 = sbr.rel (0) target = $region5
    $region4: #{_lambda_.1} parent=1 // pred_region
      %s15 = ssub.s32 128, 32
      %16 = vsyncadd [#allocation3], %s15
      %s17 = sshll.u32 [#allocation2], 4
      %s18 = int_to_ptr.vmem [resolvable:$true] %s17
      %23 = dma.hbm_to_vmem [thread:$0]  %s0, 32, %s18, [#allocation3], 32, 32, 2
    $region5: #{_lambda_.1} parent=1 // pred_fallthru
      _
    // Predicated region
    $region6: #{_lambda_.1} parent=1 // pred_check
      _
    $region7: #{_lambda_.1} parent=1 // pred_check_branch
      %25 = sbr.rel (0) target = $region9
    $region8: #{_lambda_.1} parent=1 // pred_region
      %s27 = ssub.s32 256, 256
      %28 = vsyncadd [#allocation5], %s27
      %s29 = sshll.u32 [#allocation4], 4
      %s30 = int_to_ptr.vmem [resolvable:$true] %s29
      %35 = dma.hbm_to_vmem [thread:$0]  %s1, 256, %s30, [#allocation5], 64, 64, 4
    $region9: #{_lambda_.1} parent=1 // pred_fallthru
      _
    // Predicated region
    $region10: #{_lambda_.1} parent=1 // pred_check
      _
    $region11: #{_lambda_.1} parent=1 // pred_check_branch
      %37 = sbr.rel (0) target = $region13
    $region12: #{_lambda_.1} parent=1 // pred_region
      _
    $region13: #{_lambda_.1} parent=1 // pred_fallthru
      _
    // Predicated region
    $region14: #{_lambda_.1} parent=1 // pred_check
      _
    $region15: #{_lambda_.1} parent=1 // pred_check_branch
      %39 = sbr.rel (0) target = $region17
    $region16: #{_lambda_.1} parent=1 // pred_region
      %s41 = ssub.s32 1024, 1024
      %42 = vsyncadd [#allocation5], %s41
      %s43 = sshll.u32 [#allocation6], 4
      %s44 = int_to_ptr.vmem [resolvable:$true] %s43
      %49 = dma.hbm_to_vmem [thread:$0]  %s3, 1024, %s44, [#allocation5], 64, 64, 4
    $region17: #{_lambda_.1} parent=1 // pred_fallthru
      _
    // Predicated region
    $region18: #{_lambda_.1} parent=1 // pred_check
      _
    $region19: #{_lambda_.1} parent=1 // pred_check_branch
      %51 = sbr.rel (0) target = $region21
    $region20: #{_lambda_.1} parent=1 // pred_region
      _
    $region21: #{_lambda_.1} parent=1 // pred_fallthru
      _
    // Predicated region
    $region22: #{_lambda_.1} parent=1 // pred_check
      _
    $region23: #{_lambda_.1} parent=1 // pred_check_branch
      %53 = sbr.rel (0) target = $region25
    $region24: #{_lambda_.1} parent=1 // pred_region
      %54 = dma.done [#allocation3], 128
    $region25: #{_lambda_.1} parent=1 // pred_fallthru
      _
    // Predicated region
    $region26: #{_lambda_.1} parent=1 // pred_check
      _
    $region27: #{_lambda_.1} parent=1 // pred_check_branch
      %56 = sbr.rel (0) target = $region29
    $region28: #{_lambda_.1} parent=1 // pred_region
      %57 = dma.done [#allocation5], 256
    $region29: #{_lambda_.1} parent=1 // pred_fallthru
      _
    // Predicated region
    $region30: #{_lambda_.1} parent=1 // pred_check
      _
    $region31: #{_lambda_.1} parent=1 // pred_check_branch
      %59 = sbr.rel (0) target = $region33
    $region32: #{_lambda_.1} parent=1 // pred_region
      %60 = dma.done [#allocation5], 1024
    $region33: #{_lambda_.1} parent=1 // pred_fallthru
      _
    %v62 = vld [vmem:[#allocation2] sm:$0xff]
    %v63 = vpack.c.bf16 %v62, %v62
    %v64 = vld [vmem:[#allocation4] sm:$0xf]
    %v65 = vld [vmem:[#allocation4 + $0x4] sm:$0xf]
    %v66 = vld [vmem:[#allocation4 + $0x8] sm:$0xf]
    %v67 = vld [vmem:[#allocation4 + $0xc] sm:$0xf]
    %v68 = vld [vmem:[%s2] sm:$0x1]
    %v70 = vlaneseq
    %v71 = vshrl.u32 %v70, 7
    %v72 = vsub.s32 0, %v71
    %v73 = vrot.slane %v68, %v72
    %v79 = vunpack.c.l.b16 %v64
    %v80 = vunpack.c.l.b16 %v65
    %v81 = vunpack.c.l.b16 %v66
    %v82 = vunpack.c.l.b16 %v67
    %v83 = vpack.c.b16 %v80, %v79
    %v84 = vpack.c.b16 %v82, %v81
    %vm87 = vcmask 261120
    %v89 = vsel %vm87, %v63, 0
    %91 = vmatprep.subr.bf16.mxu0 0
    %92 = vmatpush1.bf16.msra.mxu0 %v83
    %93 = vmatprep.subr.bf16.mxu0 0
    %94 = vmatpush1.bf16.msra.mxu0 %v84
    %95 = vmatprep.subr.bf16.mxu0 0
    %96 = vmatpush1.bf16.msra.mxu0 0
    %97 = vmatprep.subr.bf16.mxu0 0
    %98 = vmatpush1.bf16.msra.mxu0 0
    %99 = vmatprep.subr.bf16.mxu0 0
    %100 = vmatpush1.bf16.msra.mxu0 0
    %101 = vmatprep.subr.bf16.mxu0 0
    %102 = vmatpush1.bf16.msra.mxu0 0
    %103 = vmatprep.subr.bf16.mxu0 0
    %104 = vmatpush1.bf16.msra.mxu0 0
    %105 = vmatprep.subr.bf16.mxu0 0
    %106 = vmatpush1.bf16.msra.mxu0 0
    %107 = vmatprep.subr.bf16.mxu0 0
    %108 = vmatpush1.bf16.msra.mxu0 0
    %109 = vmatprep.subr.bf16.mxu0 0
    %110 = vmatpush1.bf16.msra.mxu0 0
    %111 = vmatprep.subr.bf16.mxu0 0
    %112 = vmatpush1.bf16.msra.mxu0 0
    %113 = vmatprep.subr.bf16.mxu0 0
    %114 = vmatpush1.bf16.msra.mxu0 0
    %115 = vmatprep.subr.bf16.mxu0 0
    %116 = vmatpush1.bf16.msra.mxu0 0
    %117 = vmatprep.subr.bf16.mxu0 0
    %118 = vmatpush1.bf16.msra.mxu0 0
    %119 = vmatprep.subr.bf16.mxu0 0
    %120 = vmatpush1.bf16.msra.mxu0 0
    %121 = vmatprep.subr.bf16.mxu0 0
    %122 = vmatpush1.bf16.msra.mxu0 0
    %123 = vmatprep.mubr.bf16.mxu0 0
    %124 = vmatmul.mubr.bf16.gmra.mrb[0].mxu0 %v89
    %v125 = vpop.f32.mrb[0].mxu0
    %v126 = vadd.f32 %v73, %v125
    %v127 = vpop.f32.mrb[0].mxu0
    %v128 = vpop.f32.mrb[0].mxu0
    %v129 = vpop.f32.mrb[0].mxu0
    %130 = vdwg.mxu0
    %v131 = vtanh.pop %v126
    %v132 = vmul.f32 %v131, 0.51
    %v133 = vmul.f32 %v126, %v126
    %v134 = vpack.c.bf16 %v133, %v133
    %v135 = vld [vmem:[#allocation6] sm:$0xf]
    %v136 = vld [vmem:[#allocation6 + $0x4] sm:$0xf]
    %v137 = vld [vmem:[#allocation6 + $0x8] sm:$0xf]
    %v138 = vld [vmem:[#allocation6 + $0xc] sm:$0xf]
    %v139 = vld [vmem:[#allocation6 + $0x10] sm:$0xf]
    %v140 = vld [vmem:[#allocation6 + $0x14] sm:$0xf]
    %v141 = vld [vmem:[#allocation6 + $0x18] sm:$0xf]
    %v142 = vld [vmem:[#allocation6 + $0x1c] sm:$0xf]
    %v143 = vld [vmem:[#allocation6 + $0x20] sm:$0xf]
    %v144 = vld [vmem:[#allocation6 + $0x24] sm:$0xf]
    %v145 = vld [vmem:[#allocation6 + $0x28] sm:$0xf]
    %v146 = vld [vmem:[#allocation6 + $0x2c] sm:$0xf]
    %v147 = vld [vmem:[#allocation6 + $0x30] sm:$0xf]
    %v148 = vld [vmem:[#allocation6 + $0x34] sm:$0xf]
    %v149 = vld [vmem:[#allocation6 + $0x38] sm:$0xf]
    %v150 = vld [vmem:[#allocation6 + $0x3c] sm:$0xf]
    %v167 = vunpack.c.l.b16 %v135
    %v168 = vunpack.c.l.b16 %v136
    %v169 = vunpack.c.l.b16 %v137
    %v170 = vunpack.c.l.b16 %v138
    %v171 = vunpack.c.l.b16 %v139
    %v172 = vunpack.c.l.b16 %v140
    %v173 = vunpack.c.l.b16 %v141
    %v174 = vunpack.c.l.b16 %v142
    %v175 = vunpack.c.l.b16 %v143
    %v176 = vunpack.c.l.b16 %v144
    %v177 = vunpack.c.l.b16 %v145
    %v178 = vunpack.c.l.b16 %v146
    %v179 = vunpack.c.l.b16 %v147
    %v180 = vunpack.c.l.b16 %v148
    %v181 = vunpack.c.l.b16 %v149
    %v182 = vunpack.c.l.b16 %v150
    %v183 = vpack.c.b16 %v168, %v167
    %v184 = vpack.c.b16 %v170, %v169
    %v185 = vpack.c.b16 %v172, %v171
    %v186 = vpack.c.b16 %v174, %v173
    %v187 = vpack.c.b16 %v176, %v175
    %v188 = vpack.c.b16 %v178, %v177
    %v189 = vpack.c.b16 %v180, %v179
    %v190 = vpack.c.b16 %v182, %v181
    %199 = vmatprep.subr.bf16.mxu0 0
    %200 = vmatpush1.bf16.msra.mxu0 %v183
    %201 = vmatprep.subr.bf16.mxu0 0
    %202 = vmatpush1.bf16.msra.mxu0 %v184
    %203 = vmatprep.subr.bf16.mxu0 0
    %204 = vmatpush1.bf16.msra.mxu0 %v185
    %205 = vmatprep.subr.bf16.mxu0 0
    %206 = vmatpush1.bf16.msra.mxu0 %v186
    %207 = vmatprep.subr.bf16.mxu0 0
    %208 = vmatpush1.bf16.msra.mxu0 %v187
    %209 = vmatprep.subr.bf16.mxu0 0
    %210 = vmatpush1.bf16.msra.mxu0 %v188
    %211 = vmatprep.subr.bf16.mxu0 0
    %212 = vmatpush1.bf16.msra.mxu0 %v189
    %213 = vmatprep.subr.bf16.mxu0 0
    %214 = vmatpush1.bf16.msra.mxu0 %v190
    %215 = vmatprep.subr.bf16.mxu0 0
    %216 = vmatpush1.bf16.msra.mxu0 0
    %217 = vmatprep.subr.bf16.mxu0 0
    %218 = vmatpush1.bf16.msra.mxu0 0
    %219 = vmatprep.subr.bf16.mxu0 0
    %220 = vmatpush1.bf16.msra.mxu0 0
    %221 = vmatprep.subr.bf16.mxu0 0
    %222 = vmatpush1.bf16.msra.mxu0 0
    %223 = vmatprep.subr.bf16.mxu0 0
    %224 = vmatpush1.bf16.msra.mxu0 0
    %225 = vmatprep.subr.bf16.mxu0 0
    %226 = vmatpush1.bf16.msra.mxu0 0
    %227 = vmatprep.subr.bf16.mxu0 0
    %228 = vmatpush1.bf16.msra.mxu0 0
    %229 = vmatprep.subr.bf16.mxu0 0
    %230 = vmatpush1.bf16.msra.mxu0 0
    %231 = vmatprep.mubr.bf16.mxu0 0
    %232 = vmatmul.mubr.bf16.gmra.mrb[0].mxu0 %v134
    %v233 = vpop.f32.mrb[0].mxu0
    %v234 = vadd.f32 0.0, %v233
    %v235 = vpop.f32.mrb[0].mxu0
    %v236 = vpop.f32.mrb[0].mxu0
    %v237 = vpop.f32.mrb[0].mxu0
    %238 = vdwg.mxu0
    %v239 = vmax.f32 %v234, 1e-24
    %v240 = vrsqrt.pop %v239
    %v241 = vmul.f32 %v126, %v240
    %v242 = vld [vmem:[%s4] sm:$0x1]
    %vm243 = vcmp.gt.f32.partialorder %v242, 0.0
    %v244 = vsel %vm243, 1, 0
    %v245 = vlaneseq
    %v246 = vshrl.u32 %v245, 7
    %v247 = vsub.s32 0, %v246
    %v248 = vrot.slane %v244, %v247
    %vm249 = vcmp.eq.s32.totalorder %v248, 1
    %v250 = vsel %vm249, %v132, %v241
    %251 = vst [vmem:[#allocation7] sm:$0xff] %v250
    // Predicated region
    $region34: #{_lambda_.1} parent=1 // pred_check
      _
    $region35: #{_lambda_.1} parent=1 // pred_check_branch
      %253 = sbr.rel (0) target = $region37
    $region36: #{_lambda_.1} parent=1 // pred_region
      // Predicated region
      $region38: #{_lambda_.1} parent=36 // pred_check
        _
      $region39: #{_lambda_.1} parent=36 // pred_check_branch
        %255 = sbr.rel (0) target = $region41
      $region40: #{_lambda_.1} parent=36 // pred_region
        // Predicated region
        $region42: #{_lambda_.1} parent=40 // pred_check
          _
        $region43: #{_lambda_.1} parent=40 // pred_check_branch
          %257 = sbr.rel target = $region45
        $region44: #{_lambda_.1} parent=40 // pred_region
          // Predicated region
          $region57: #{_lambda_.1} parent=44 // pred_check
            _
          $region58: #{_lambda_.1} parent=44 // pred_check_branch
            %272 = sbr.rel (0) target = $region60
          $region59: #{_lambda_.1} parent=44 // pred_region
            loop: start=0, step=1, limit=1
            $region61: #{_lambda_.1} parent=59 // loop_pre_header
              _
            $region62: #{_lambda_.1} parent=59 // loop_header
              %s275 = sphi 0, %s279
              %p276 = scmp.ge.s32.totalorder %s275, 1
              %s280 = sphi [#allocation7], [#allocation7]
              %s281 = sphi %s5, %s5
            $region63: #{_lambda_.1} parent=59 // loop_header_branch
              %278 = sbr.rel (%p276) target = $region67
            $region64: #{_lambda_.1} parent=59 // loop_body
              %v282 = vld [vmem:[%s280] sm:$0x3]
              %283 = vst [vmem:[%s281] sm:$0x3] %v282
            $region65: #{_lambda_.1} parent=59 // loop_footer
              %s279 = sadd.s32 1, %s275
            $region66: #{_lambda_.1} parent=59 // loop_footer_branch
              %274 = sbr.rel target = $region62
            $region67: #{_lambda_.1} parent=59 // loop_exit
              _
          $region60: #{_lambda_.1} parent=44 // pred_fallthru
            _
        $region45: #{_lambda_.1} parent=40 // pred_fallthru
          _
        // Predicated region
        $region46: #{_lambda_.1} parent=40 // pred_check
          _
        $region47: #{_lambda_.1} parent=40 // pred_check_branch
          %259 = sbr.rel (0) target = $region49
        $region48: #{_lambda_.1} parent=40 // pred_region
          loop: start=0, step=1, limit=1
          $region50: #{_lambda_.1} parent=48 // loop_pre_header
            _
          $region51: #{_lambda_.1} parent=48 // loop_header
            %s262 = sphi 0, %s266
            %p263 = scmp.ge.s32.totalorder %s262, 1
            %s267 = sphi [#allocation7], [#allocation7]
            %s268 = sphi %s5, %s5
          $region52: #{_lambda_.1} parent=48 // loop_header_branch
            %265 = sbr.rel (%p263) target = $region56
          $region53: #{_lambda_.1} parent=48 // loop_body
            %v269 = vld [vmem:[%s267] sm:$0x3]
            %270 = vst [vmem:[%s268] sm:$0x3] %v269
          $region54: #{_lambda_.1} parent=48 // loop_footer
            %s266 = sadd.s32 1, %s262
          $region55: #{_lambda_.1} parent=48 // loop_footer_branch
            %261 = sbr.rel target = $region51
          $region56: #{_lambda_.1} parent=48 // loop_exit
            _
        $region49: #{_lambda_.1} parent=40 // pred_fallthru
          _
      $region41: #{_lambda_.1} parent=36 // pred_fallthru
        _
      %284 = vnop
    $region37: #{_lambda_.1} parent=1 // pred_fallthru
      _
    // Predicated region
    $region68: #{_lambda_.1} parent=1 // pred_check
      _
    $region69: #{_lambda_.1} parent=1 // pred_check_branch
      %286 = sbr.rel (0) target = $region71
    $region70: #{_lambda_.1} parent=1 // pred_region
      _
    $region71: #{_lambda_.1} parent=1 // pred_fallthru
      _
    %287 = vsyncpa [#allocation3], 1
    %288 = vsyncpa [#allocation5], 1

</llo_original>
